<compile_context>
chip_gen: v5e
topology: v5e:2x2
jax: 0.10.0
libtpu: 0.0.40
codegen_flags: <defaults>
</compile_context>

<pallas_src>
import functools
import math

import jax
import jax.numpy as jnp
from jax import lax
from jax.experimental import pallas as pl
from jax.experimental.pallas import tpu as pltpu


def _hash_u32(x):
    """lowbias32 integer hash (uint32 -> uint32); pure VPU int ops."""
    x = x ^ (x >> jnp.uint32(17))
    x = x * jnp.uint32(0xED5AD4BB)
    x = x ^ (x >> jnp.uint32(11))
    x = x * jnp.uint32(0xAC4C1B51)
    x = x ^ (x >> jnp.uint32(15))
    x = x * jnp.uint32(0x31848BAB)
    x = x ^ (x >> jnp.uint32(14))
    return x


def _bits_to_unit_float(bits):
    """Map 32 random bits to f32 in [0, 1) via the exponent/mantissa trick."""
    mant = bits >> jnp.uint32(9)  # top 23 bits -> mantissa of 1.0f
    f12 = lax.bitcast_convert_type(jnp.uint32(0x3F800000) | mant, jnp.float32)
    return f12 - jnp.float32(1.0)  # [1, 2) -> [0, 1)


def _randn_slab_kernel(seed_ref, o_ref, *, block_rows):
    """Fill the (block_rows, 128) output tile with N(0,1) samples.

    Top half rows get the cos branch, bottom half the sin branch of the same
    Box-Muller pairs -> half the transcendental work per sample.
    """
    half = block_rows // 2
    pid = pl.program_id(0).astype(jnp.uint32)

    seed_u = seed_ref[0].astype(jnp.uint32)
    mix = _hash_u32(seed_u + jnp.uint32(0x9E3779B9))

    row = lax.broadcasted_iota(jnp.int32, (half, 128), 0).astype(jnp.uint32)
    col = lax.broadcasted_iota(jnp.int32, (half, 128), 1).astype(jnp.uint32)
    # Globally unique per-element counter (includes the grid index -> distinct
    # random streams per block even though the seed is the same).
    gidx = ((pid * jnp.uint32(half) + row) << jnp.uint32(7)) + col

    bits1 = _hash_u32((gidx << jnp.uint32(1)) + mix)
    bits2 = _hash_u32((gidx << jnp.uint32(1)) + jnp.uint32(1) + mix)

    u1 = jnp.float32(1.0) - _bits_to_unit_float(bits1)  # (0, 1] -> log is finite
    u2 = _bits_to_unit_float(bits2)                      # [0, 1)

    r = jnp.sqrt(jnp.float32(-2.0) * jnp.log(u1))
    theta = jnp.float32(2.0 * math.pi) * u2

    o_ref[0:half, :] = r * jnp.cos(theta)
    o_ref[half:block_rows, :] = r * jnp.sin(theta)


def _round_up(a, m):
    return (a + m - 1) // m * m


def random_baseline1_forward(x, seed: int = 0):
    """Pallas equivalent of RandomBaseline1.forward: randn((x.shape[0], 15))."""
    batch = x.shape[0]
    n = batch * 15

    rows_needed = max(pl.cdiv(n, 128), 1)
    # Keep blocks lane-dense and sublane-aligned; 512x128 f32 tile = 256 KiB,
    # comfortably under the v7x 32 MiB scoped-VMEM default even double-buffered.
    block_rows = min(512, _round_up(rows_needed, 16))
    padded_rows = _round_up(rows_needed, block_rows)
    grid = (padded_rows // block_rows,)

    seed_arr = jnp.asarray([seed], dtype=jnp.int32)

    slab = pl.pallas_call(
        functools.partial(_randn_slab_kernel, block_rows=block_rows),
        out_shape=jax.ShapeDtypeStruct((padded_rows, 128), jnp.float32),
        grid=grid,
        in_specs=[pl.BlockSpec(memory_space=pltpu.MemorySpace.SMEM)],
        out_specs=pl.BlockSpec((block_rows, 128), lambda i: (i, 0)),
        compiler_params=pltpu.CompilerParams(
            dimension_semantics=("parallel",)),  # shards across v7x's 2 TCs
    )(seed_arr)

    # Layout plumbing outside the kernel: flatten, keep the first batch*15.
    return slab.reshape(-1)[:n].reshape(batch, 15)


# TODO(synk): for tiny batches (e.g. batch=2) fixed pallas_call overhead dominates;
# in a full model this RNG should be fused into the surrounding step.

if __name__ == "__main__":
    key = jax.random.PRNGKey(0)
    # batch=2 players, last 10 games x 15 features = 150 flattened features.
    x = jax.random.normal(key, (2, 150), dtype=jnp.float32)

    out = random_baseline1_forward(x, seed=0)
    out = jax.block_until_ready(out)
    assert out.shape == (2, 15), out.shape
    assert out.dtype == jnp.float32, out.dtype
    assert bool(jnp.all(jnp.isfinite(out))), "non-finite samples"

    # Larger batch: exercises the multi-block parallel grid and checks moments.
    x_big = jnp.zeros((8192, 150), dtype=jnp.float32)
    out_big = jax.block_until_ready(random_baseline1_forward(x_big, seed=7))
    assert out_big.shape == (8192, 15), out_big.shape
    assert bool(jnp.all(jnp.isfinite(out_big))), "non-finite samples (big)"
    mean = float(jnp.mean(out_big))
    std = float(jnp.std(out_big))
    assert abs(mean) < 0.1, f"mean off: {mean}"
    assert abs(std - 1.0) < 0.1, f"std off: {std}"

    print("KERNEL_OK")
</pallas_src>

<mosaic_0001>
module attributes {stable_mosaic.version = 11 : i64} {
  func.func @_randn_slab_kernel(%arg0: i32, %arg1: memref<1xi32, #tpu.memory_space<smem>>, %arg2: memref<16x128xf32, #tpu.memory_space<vmem>>) attributes {dimension_semantics = [#tpu.dimension_semantics<parallel>], iteration_bounds = array<i64: 1>, scalar_prefetch = 0 : i64, scratch_operands = 0 : i64, tpu.core_type = #tpu.core_type<tc>, window_params = [{transform_indices = @transform_0, window_bounds = array<i64: 1>}, {transform_indices = @transform_1, window_bounds = array<i64: 16, 128>}]} {
    %c0 = arith.constant 0 : index
    %0 = memref.load %arg1[%c0] : memref<1xi32, #tpu.memory_space<smem>>
    %c-1640531527_i32 = arith.constant -1640531527 : i32
    %1 = arith.addi %0, %c-1640531527_i32 : i32
    %c17_i32 = arith.constant 17 : i32
    %2 = arith.shrui %1, %c17_i32 : i32
    %3 = arith.xori %1, %2 : i32
    %c-312814405_i32 = arith.constant -312814405 : i32
    %4 = arith.muli %3, %c-312814405_i32 : i32
    %c11_i32 = arith.constant 11 : i32
    %5 = arith.shrui %4, %c11_i32 : i32
    %6 = arith.xori %4, %5 : i32
    %c-1404298415_i32 = arith.constant -1404298415 : i32
    %7 = arith.muli %6, %c-1404298415_i32 : i32
    %c15_i32 = arith.constant 15 : i32
    %8 = arith.shrui %7, %c15_i32 : i32
    %9 = arith.xori %7, %8 : i32
    %c830770091_i32 = arith.constant 830770091 : i32
    %10 = arith.muli %9, %c830770091_i32 : i32
    %c14_i32 = arith.constant 14 : i32
    %11 = arith.shrui %10, %c14_i32 : i32
    %12 = arith.xori %10, %11 : i32
    %13 = tpu.iota {dimensions = array<i32: 0>} : vector<8x128xi32>
    %14 = tpu.iota {dimensions = array<i32: 1>} : vector<8x128xi32>
    %c8_i32 = arith.constant 8 : i32
    %15 = arith.muli %arg0, %c8_i32 : i32
    %16 = vector.broadcast %15 : i32 to vector<8x128xi32>
    %17 = arith.addi %16, %13 : vector<8x128xi32>
    %c7_i32 = arith.constant 7 : i32
    %18 = vector.broadcast %c7_i32 : i32 to vector<8x128xi32>
    %19 = arith.shli %17, %18 : vector<8x128xi32>
    %20 = arith.addi %19, %14 : vector<8x128xi32>
    %c1_i32 = arith.constant 1 : i32
    %21 = vector.broadcast %c1_i32 : i32 to vector<8x128xi32>
    %22 = arith.shli %20, %21 : vector<8x128xi32>
    %23 = vector.broadcast %12 : i32 to vector<8x128xi32>
    %24 = arith.addi %22, %23 : vector<8x128xi32>
    %c17_i32_0 = arith.constant 17 : i32
    %25 = vector.broadcast %c17_i32_0 : i32 to vector<8x128xi32>
    %26 = arith.shrui %24, %25 : vector<8x128xi32>
    %27 = arith.xori %24, %26 : vector<8x128xi32>
    %c-312814405_i32_1 = arith.constant -312814405 : i32
    %28 = vector.broadcast %c-312814405_i32_1 : i32 to vector<8x128xi32>
    %29 = arith.muli %27, %28 : vector<8x128xi32>
    %c11_i32_2 = arith.constant 11 : i32
    %30 = vector.broadcast %c11_i32_2 : i32 to vector<8x128xi32>
    %31 = arith.shrui %29, %30 : vector<8x128xi32>
    %32 = arith.xori %29, %31 : vector<8x128xi32>
    %c-1404298415_i32_3 = arith.constant -1404298415 : i32
    %33 = vector.broadcast %c-1404298415_i32_3 : i32 to vector<8x128xi32>
    %34 = arith.muli %32, %33 : vector<8x128xi32>
    %c15_i32_4 = arith.constant 15 : i32
    %35 = vector.broadcast %c15_i32_4 : i32 to vector<8x128xi32>
    %36 = arith.shrui %34, %35 : vector<8x128xi32>
    %37 = arith.xori %34, %36 : vector<8x128xi32>
    %c830770091_i32_5 = arith.constant 830770091 : i32
    %38 = vector.broadcast %c830770091_i32_5 : i32 to vector<8x128xi32>
    %39 = arith.muli %37, %38 : vector<8x128xi32>
    %c14_i32_6 = arith.constant 14 : i32
    %40 = vector.broadcast %c14_i32_6 : i32 to vector<8x128xi32>
    %41 = arith.shrui %39, %40 : vector<8x128xi32>
    %42 = arith.xori %39, %41 : vector<8x128xi32>
    %c1_i32_7 = arith.constant 1 : i32
    %43 = vector.broadcast %c1_i32_7 : i32 to vector<8x128xi32>
    %44 = arith.shli %20, %43 : vector<8x128xi32>
    %c1_i32_8 = arith.constant 1 : i32
    %45 = vector.broadcast %c1_i32_8 : i32 to vector<8x128xi32>
    %46 = arith.addi %44, %45 : vector<8x128xi32>
    %47 = vector.broadcast %12 : i32 to vector<8x128xi32>
    %48 = arith.addi %46, %47 : vector<8x128xi32>
    %c17_i32_9 = arith.constant 17 : i32
    %49 = vector.broadcast %c17_i32_9 : i32 to vector<8x128xi32>
    %50 = arith.shrui %48, %49 : vector<8x128xi32>
    %51 = arith.xori %48, %50 : vector<8x128xi32>
    %c-312814405_i32_10 = arith.constant -312814405 : i32
    %52 = vector.broadcast %c-312814405_i32_10 : i32 to vector<8x128xi32>
    %53 = arith.muli %51, %52 : vector<8x128xi32>
    %c11_i32_11 = arith.constant 11 : i32
    %54 = vector.broadcast %c11_i32_11 : i32 to vector<8x128xi32>
    %55 = arith.shrui %53, %54 : vector<8x128xi32>
    %56 = arith.xori %53, %55 : vector<8x128xi32>
    %c-1404298415_i32_12 = arith.constant -1404298415 : i32
    %57 = vector.broadcast %c-1404298415_i32_12 : i32 to vector<8x128xi32>
    %58 = arith.muli %56, %57 : vector<8x128xi32>
    %c15_i32_13 = arith.constant 15 : i32
    %59 = vector.broadcast %c15_i32_13 : i32 to vector<8x128xi32>
    %60 = arith.shrui %58, %59 : vector<8x128xi32>
    %61 = arith.xori %58, %60 : vector<8x128xi32>
    %c830770091_i32_14 = arith.constant 830770091 : i32
    %62 = vector.broadcast %c830770091_i32_14 : i32 to vector<8x128xi32>
    %63 = arith.muli %61, %62 : vector<8x128xi32>
    %c14_i32_15 = arith.constant 14 : i32
    %64 = vector.broadcast %c14_i32_15 : i32 to vector<8x128xi32>
    %65 = arith.shrui %63, %64 : vector<8x128xi32>
    %66 = arith.xori %63, %65 : vector<8x128xi32>
    %c9_i32 = arith.constant 9 : i32
    %67 = vector.broadcast %c9_i32 : i32 to vector<8x128xi32>
    %68 = arith.shrui %42, %67 : vector<8x128xi32>
    %c1065353216_i32 = arith.constant 1065353216 : i32
    %69 = vector.broadcast %c1065353216_i32 : i32 to vector<8x128xi32>
    %70 = arith.ori %69, %68 : vector<8x128xi32>
    %71 = tpu.bitcast %70 : vector<8x128xi32> -> vector<8x128xf32>
    %cst = arith.constant 1.000000e+00 : f32
    %72 = vector.broadcast %cst : f32 to vector<8x128xf32>
    %73 = arith.subf %71, %72 : vector<8x128xf32>
    %cst_16 = arith.constant 1.000000e+00 : f32
    %74 = vector.broadcast %cst_16 : f32 to vector<8x128xf32>
    %75 = arith.subf %74, %73 : vector<8x128xf32>
    %c9_i32_17 = arith.constant 9 : i32
    %76 = vector.broadcast %c9_i32_17 : i32 to vector<8x128xi32>
    %77 = arith.shrui %66, %76 : vector<8x128xi32>
    %c1065353216_i32_18 = arith.constant 1065353216 : i32
    %78 = vector.broadcast %c1065353216_i32_18 : i32 to vector<8x128xi32>
    %79 = arith.ori %78, %77 : vector<8x128xi32>
    %80 = tpu.bitcast %79 : vector<8x128xi32> -> vector<8x128xf32>
    %cst_19 = arith.constant 1.000000e+00 : f32
    %81 = vector.broadcast %cst_19 : f32 to vector<8x128xf32>
    %82 = arith.subf %80, %81 : vector<8x128xf32>
    %83 = math.log %75 : vector<8x128xf32>
    %cst_20 = arith.constant -2.000000e+00 : f32
    %84 = vector.broadcast %cst_20 : f32 to vector<8x128xf32>
    %85 = arith.mulf %84, %83 : vector<8x128xf32>
    %86 = math.sqrt %85 : vector<8x128xf32>
    %cst_21 = arith.constant 6.28318548 : f32
    %87 = vector.broadcast %cst_21 : f32 to vector<8x128xf32>
    %88 = arith.mulf %87, %82 : vector<8x128xf32>
    %89 = math.cos %88 : vector<8x128xf32>
    %90 = arith.mulf %86, %89 : vector<8x128xf32>
    %c0_22 = arith.constant 0 : index
    %c0_23 = arith.constant 0 : index
    %91 = vector.load %arg2[%c0_22, %c0_23] : memref<16x128xf32, #tpu.memory_space<vmem>>, vector<8x128xf32>
    tpu.vector_store %arg2[%c0_22, %c0_23], %90 {strides = array<i32>} : memref<16x128xf32, #tpu.memory_space<vmem>>, vector<8x128xf32>,
    %92 = math.sin %88 : vector<8x128xf32>
    %93 = arith.mulf %86, %92 : vector<8x128xf32>
    %c8 = arith.constant 8 : index
    %c0_24 = arith.constant 0 : index
    %94 = vector.load %arg2[%c8, %c0_24] : memref<16x128xf32, #tpu.memory_space<vmem>>, vector<8x128xf32>
    tpu.vector_store %arg2[%c8, %c0_24], %93 {strides = array<i32>} : memref<16x128xf32, #tpu.memory_space<vmem>>, vector<8x128xf32>,
    return
  }
  func.func @transform_0(%arg0: i32) -> i32 {
    %c0_i32 = arith.constant 0 : i32
    %c0_i32_0 = arith.constant 0 : i32
    return %c0_i32 : i32
  }
  func.func @transform_1(%arg0: i32) -> (i32, i32) {
    %c0_i32 = arith.constant 0 : i32
    %c0_i32_0 = arith.constant 0 : i32
    return %arg0, %c0_i32 : i32, i32
  }
}

</mosaic_0001>

<llo_original>
// kernel: tpu_custom_call.1
$region0: #{tpu_custom_call.1}
  #allocation0 [shape = 'u32[]', space=smem, size = 0x4, offset = 0x4, fixed_abs, tag = 'smem constant byte address 0x4 - core index']
  #allocation1 [shape = 'u32[72,128]{1,0:T(1,128)}', space=vmem, size = 0x9000, scoped, tag = 'internal scratch']
  #allocation2 [shape = 's32[1]{0:T(128)S(6)}', space=smem, size = 0x200, scoped, tag = 'scoped memory for tpu_custom_call.1']
  %s0 = inlined_call_operand.<no memory space> [shape: s32[1], index: 0, kind: input, shape index: {}]
  %s1 = inlined_call_operand.hbm [shape: f32[16,128], index: 1, kind: output, shape index: {}]
  %s2 = sld [smem:[#allocation0]]
  $region14: #{tpu_custom_call.1} parent=0
    _
  %s4 = ssub.s32 1, %s2
  %s5 = scalar_select 0, %s4, %s2
  %6 = sst [smem:[#allocation2]] %s0
  $region1: #{tpu_custom_call.1} parent=0
    #allocation3 [shape = 'u8[8192]{0}', space=vmem, size = 0x2000, scoped, tag = 'output window, operand 0, single buffered']
    #allocation4 [shape = 's32[1]{0}', space=sflag, size = 0x4, scoped, tag = 'scoped memory for tpu_custom_call.1']
    %7 = vsyncpa [#allocation4], 0
    // Predicated region
    $region2: #{tpu_custom_call.1} parent=1 // pred_check
      _
    $region3: #{tpu_custom_call.1} parent=1 // pred_check_branch
      %9 = sbr.rel (0) target = $region5
    $region4: #{tpu_custom_call.1} parent=1 // pred_region
      _
    $region5: #{tpu_custom_call.1} parent=1 // pred_fallthru
      _
    %s10 = sld [smem:[#allocation2]]
    %s11 = sadd.s32 %s10, 2654435769
    %s12 = sshrl.u32 %s11, 17
    %s13 = sxor.u32 %s11, %s12
    %s14 = smul.u32 %s13, 3982152891
    %s15 = sshrl.u32 %s14, 11
    %s16 = sxor.u32 %s14, %s15
    %s17 = smul.u32 %s16, 2890668881
    %s18 = sshrl.u32 %s17, 15
    %s19 = sxor.u32 %s17, %s18
    %s20 = smul.u32 %s19, 830770091
    %s21 = sshrl.u32 %s20, 14
    %s22 = sxor.u32 %s20, %s21
    %v23 = vlaneseq
    %v24 = vshrl.u32 %v23, 7
    %v25 = vlaneseq
    %v26 = vand.u32 %v25, 127
    %s27 = smul.u32 0, 8
    %v28 = vstv %s27
    %v29 = vadd.s32 %v28, %v24
    %v30 = vshll.u32 %v29, 7
    %v31 = vadd.s32 %v30, %v26
    %v32 = vshll.u32 %v31, 1
    %v33 = vstv %s22
    %v34 = vadd.s32 %v32, %v33
    %v35 = vshrl.u32 %v34, 17
    %v36 = vxor.u32 %v34, %v35
    %v37 = vmul.u32 %v36, 3982152891
    %v38 = vshrl.u32 %v37, 11
    %v39 = vxor.u32 %v37, %v38
    %v40 = vmul.u32 %v39, 2890668881
    %v41 = vshrl.u32 %v40, 15
    %v42 = vxor.u32 %v40, %v41
    %v43 = vmul.u32 %v42, 830770091
    %v44 = vshrl.u32 %v43, 14
    %v45 = vxor.u32 %v43, %v44
    %v46 = vadd.s32 %v32, 1
    %v47 = vadd.s32 %v46, %v33
    %v48 = vshrl.u32 %v47, 17
    %v49 = vxor.u32 %v47, %v48
    %v50 = vmul.u32 %v49, 3982152891
    %v51 = vshrl.u32 %v50, 11
    %v52 = vxor.u32 %v50, %v51
    %v53 = vmul.u32 %v52, 2890668881
    %v54 = vshrl.u32 %v53, 15
    %v55 = vxor.u32 %v53, %v54
    %v56 = vmul.u32 %v55, 830770091
    %v57 = vshrl.u32 %v56, 14
    %v58 = vxor.u32 %v56, %v57
    %v59 = vshrl.u32 %v45, 9
    %v60 = vor.u32 %v59, 1065353216
    %v62 = vsub.f32 %v60, 1.0
    %v63 = vsub.f32 1.0, %v62
    %v64 = vshrl.u32 %v58, 9
    %v65 = vor.u32 %v64, 1065353216
    %v67 = vsub.f32 %v65, 1.0
    %v68 = vlog2.pop %v63
    %v69 = vmul.f32 %v68, 0.6931472
    %v70 = vmul.f32 %v69, -2.0
    %v71 = vrsqrt.pop %v70
    %v72 = vmul.f32 %v71, %v70
    %v73 = vmul.f32 %v72, %v71
    %v74 = vmul.f32 0.5, %v73
    %v75 = vsub.f32 1.5, %v74
    %v76 = vmul.f32 %v71, %v75
    %v77 = vmul.f32 %v70, %v76
    %vm78 = vcmp.eq.f32.partialorder %v70, inf
    %v79 = vsel %vm78, %v70, %v77
    %vm80 = vcmp.eq.f32.partialorder %v70, 0.0
    %v81 = vand.u32 %v70, 2147483648
    %v82 = vsel %vm80, %v81, %v79
    %v83 = vmul.f32 %v67, 6.2831855
    %v84 = vand.u32 2147483647, %v83
    %vm85 = vcmp.le.f32.partialorder %v84, 0.7853982
    %vm86 = vcmp.lt.s32.totalorder %v83, 0
    %v87 = vand.u32 %v83, 2139095040
    %v88 = vshrl.u32 %v87, 23
    %v89 = vsub.s32 %v88, 127
    %v90 = vand.u32 2147483647, %v83
    %v91 = vand.u32 %v90, 8388607
    %v92 = vor.u32 %v91, 8388608
    %v93 = vsub.s32 0, %v92
    %v94 = vadd.s32 %v89, 1
    %vm95 = vcmp.gt.s32.totalorder %v94, 0
    %v96 = vsel %vm95, %v94, 0
    %v97 = vshrl.u32 %v96, 5
    %v98 = vand.u32 %v96, 31
    %v99 = vsub.s32 32, %v98
    %v100 = vshrl.u32 683565275, %v99
    %v101 = vshll.u32 683565275, %v98
    %v102 = vshrl.u32 2475754826, %v99
    %v103 = vor.u32 %v101, %v102
    %v104 = vshll.u32 2475754826, %v98
    %v105 = vshrl.u32 2131351028, %v99
    %v106 = vor.u32 %v104, %v105
    %v107 = vshll.u32 2131351028, %v98
    %v108 = vshrl.u32 2102212464, %v99
    %v109 = vor.u32 %v107, %v108
    %v110 = vshll.u32 2102212464, %v98
    %v111 = vshrl.u32 920167782, %v99
    %v112 = vor.u32 %v110, %v111
    %v113 = vshll.u32 920167782, %v98
    %v114 = vshrl.u32 1326507024, %v99
    %v115 = vor.u32 %v113, %v114
    %vm116 = vcmp.lt.s32.totalorder %v97, 1
    %vm117 = vcmp.lt.s32.totalorder %v97, 2
    %vm118 = vcmp.lt.s32.totalorder %v97, 3
    %vm119 = vcmp.lt.s32.totalorder %v97, 4
    %v120 = vsel %vm116, %v100, %v103
    %v121 = vsel %vm119, %v109, 2102212464
    %v122 = vsel %vm118, %v106, %v121
    %v123 = vsel %vm117, %v120, %v122
    %v124 = vsel %vm116, %v103, %v106
    %v125 = vsel %vm119, %v112, 920167782
    %v126 = vsel %vm118, %v109, %v125
    %v127 = vsel %vm117, %v124, %v126
    %v128 = vsel %vm116, %v106, %v109
    %v129 = vsel %vm119, %v115, 1326507024
    %v130 = vsel %vm118, %v112, %v129
    %v131 = vsel %vm117, %v128, %v130
    %v132 = vshll.u32 %v92, 8
    %v133 = vand.u32 %v132, 65535
    %v134 = vshrl.u32 %v132, 16
    %v135 = vand.u32 %v131, 65535
    %v136 = vshrl.u32 %v131, 16
    %v137 = vmul.u32 %v133, %v135
    %v138 = vmul.u32 %v133, %v136
    %v139 = vmul.u32 %v134, %v135
    %v140 = vmul.u32 %v134, %v136
    %v141 = vshll.u32 %v138, 16
    %v142 = vshrl.u32 %v138, 16
    %v143 = vshll.u32 %v139, 16
    %v144 = vshrl.u32 %v139, 16
    %vm145 = vc.u32 %v137, %v141
    %v146 = vsel %vm145, 1, 0
    %v147 = vadd.s32 %v137, %v141
    %v148 = vadd.s32 %v140, %v146
    %vm149 = vc.u32 %v147, %v143
    %v150 = vsel %vm149, 1, 0
    %v151 = vadd.s32 %v147, %v143
    %v152 = vadd.s32 %v148, %v150
    %v153 = vadd.s32 %v152, %v142
    %v154 = vadd.s32 %v153, %v144
    %v155 = vand.u32 %v132, 65535
    %v156 = vshrl.u32 %v132, 16
    %v157 = vand.u32 %v127, 65535
    %v158 = vshrl.u32 %v127, 16
    %v159 = vmul.u32 %v155, %v157
    %v160 = vmul.u32 %v155, %v158
    %v161 = vmul.u32 %v156, %v157
    %v162 = vmul.u32 %v156, %v158
    %v163 = vshll.u32 %v160, 16
    %v164 = vshrl.u32 %v160, 16
    %v165 = vshll.u32 %v161, 16
    %v166 = vshrl.u32 %v161, 16
    %vm167 = vc.u32 %v159, %v163
    %v168 = vsel %vm167, 1, 0
    %v169 = vadd.s32 %v159, %v163
    %v170 = vadd.s32 %v162, %v168
    %vm171 = vc.u32 %v169, %v165
    %v172 = vsel %vm171, 1, 0
    %v173 = vadd.s32 %v169, %v165
    %v174 = vadd.s32 %v170, %v172
    %v175 = vadd.s32 %v174, %v164
    %v176 = vadd.s32 %v175, %v166
    %v177 = vmul.u32 %v132, %v123
    %v178 = vadd.s32 %v154, %v173
    %vm179 = vc.u32 %v154, %v173
    %v180 = vadd.s32 %v176, 1
    %v181 = vsel %vm179, %v180, %v176
    %v182 = vadd.s32 %v177, %v181
    %v183 = vadd.s32 %v182, 536870912
    %v184 = vshrl.u32 %v183, 30
    %v185 = vshll.u32 %v184, 30
    %v186 = vsub.s32 %v182, %v185
    %vm187 = vcmp.lt.s32.totalorder %v186, 0
    %v188 = vsub.s32 0, %v186
    %v189 = vsel %vm187, %v188, %v186
    %v190 = vclz %v189
    %v191 = vsub.s32 %v190, 2
    %vm192 = vcmp.gt.s32.totalorder 0, %v191
    %v193 = vsel %vm192, 0, %v191
    %v194 = vsub.s32 32, %v193
    %v195 = vshll.u32 %v186, %v193
    %v196 = vshrl.u32 %v178, %v194
    %v197 = vor.u32 %v195, %v196
    %v198 = vsub.s32 4294967266, %v193
    %v199 = vadd.s32 %v198, 127
    %v200 = vshll.u32 %v199, 23
    %v201 = vor.u32 4788187, %v200
    %v202 = vand.u32 2147483647, %v201
    %v204 = vcvt.s32.f32 %v197
    %v205 = vmul.f32 %v204, %v202
    %v206 = vxor.u32 %v205, 2147483648
    %v207 = vsel %vm86, %v206, %v205
    %v208 = vsub.s32 4, %v184
    %v209 = vsel %vm86, %v208, %v184
    %v210 = vsel %vm85, %v83, %v207
    %v211 = vsel %vm85, 0, %v209
    %v212 = vmul.f32 %v210, %v210
    %v213 = vmul.f32 %v212, -0.001358992
    %v214 = vadd.f32 %v213, 0.041655596
    %v215 = vmul.f32 %v212, %v214
    %v216 = vadd.f32 %v215, -0.4999988
    %v217 = vmul.f32 %v212, %v216
    %v218 = vadd.f32 1.0, %v217
    %v219 = vmul.f32 %v210, %v210
    %v220 = vmul.f32 %v219, -0.00019511016
    %v221 = vadd.f32 %v220, 0.008332121
    %v222 = vmul.f32 %v219, %v221
    %v223 = vadd.f32 %v222, -0.16666654
    %v224 = vmul.f32 %v219, %v223
    %v225 = vadd.f32 %v224, 1.0
    %v226 = vmul.f32 %v225, %v210
    %vm227 = vweird.f32 %v83
    %v228 = vand.u32 %v211, 3
    %vm229 = vcmp.lt.s32.totalorder %v228, 2
    %vm230 = vcmp.eq.s32.totalorder %v228, 0
    %v231 = vxor.u32 %v226, 2147483648
    %v232 = vsel %vm230, %v218, %v231
    %vm233 = vcmp.eq.s32.totalorder %v228, 2
    %v234 = vxor.u32 %v218, 2147483648
    %v235 = vsel %vm233, %v234, %v226
    %v236 = vsel %vm229, %v232, %v235
    %v237 = vsel %vm227, nan, %v236
    %v238 = vmul.f32 %v82, %v237
    %239 = vst [vmem:[#allocation3] sm:$0xff] %v238
    %v240 = vand.u32 2147483647, %v83
    %vm241 = vcmp.le.f32.partialorder %v240, 0.7853982
    %vm242 = vcmp.lt.s32.totalorder %v83, 0
    %v243 = vand.u32 %v83, 2139095040
    %v244 = vshrl.u32 %v243, 23
    %v245 = vsub.s32 %v244, 127
    %v246 = vand.u32 2147483647, %v83
    %v247 = vand.u32 %v246, 8388607
    %v248 = vor.u32 %v247, 8388608
    %v249 = vsub.s32 0, %v248
    %v250 = vadd.s32 %v245, 1
    %vm251 = vcmp.gt.s32.totalorder %v250, 0
    %v252 = vsel %vm251, %v250, 0
    %v253 = vshrl.u32 %v252, 5
    %v254 = vand.u32 %v252, 31
    %v255 = vsub.s32 32, %v254
    %v256 = vshrl.u32 683565275, %v255
    %v257 = vshll.u32 683565275, %v254
    %v258 = vshrl.u32 2475754826, %v255
    %v259 = vor.u32 %v257, %v258
    %v260 = vshll.u32 2475754826, %v254
    %v261 = vshrl.u32 2131351028, %v255
    %v262 = vor.u32 %v260, %v261
    %v263 = vshll.u32 2131351028, %v254
    %v264 = vshrl.u32 2102212464, %v255
    %v265 = vor.u32 %v263, %v264
    %v266 = vshll.u32 2102212464, %v254
    %v267 = vshrl.u32 920167782, %v255
    %v268 = vor.u32 %v266, %v267
    %v269 = vshll.u32 920167782, %v254
    %v270 = vshrl.u32 1326507024, %v255
    %v271 = vor.u32 %v269, %v270
    %vm272 = vcmp.lt.s32.totalorder %v253, 1
    %vm273 = vcmp.lt.s32.totalorder %v253, 2
    %vm274 = vcmp.lt.s32.totalorder %v253, 3
    %vm275 = vcmp.lt.s32.totalorder %v253, 4
    %v276 = vsel %vm272, %v256, %v259
    %v277 = vsel %vm275, %v265, 2102212464
    %v278 = vsel %vm274, %v262, %v277
    %v279 = vsel %vm273, %v276, %v278
    %v280 = vsel %vm272, %v259, %v262
    %v281 = vsel %vm275, %v268, 920167782
    %v282 = vsel %vm274, %v265, %v281
    %v283 = vsel %vm273, %v280, %v282
    %v284 = vsel %vm272, %v262, %v265
    %v285 = vsel %vm275, %v271, 1326507024
    %v286 = vsel %vm274, %v268, %v285
    %v287 = vsel %vm273, %v284, %v286
    %v288 = vshll.u32 %v248, 8
    %v289 = vand.u32 %v288, 65535
    %v290 = vshrl.u32 %v288, 16
    %v291 = vand.u32 %v287, 65535
    %v292 = vshrl.u32 %v287, 16
    %v293 = vmul.u32 %v289, %v291
    %v294 = vmul.u32 %v289, %v292
    %v295 = vmul.u32 %v290, %v291
    %v296 = vmul.u32 %v290, %v292
    %v297 = vshll.u32 %v294, 16
    %v298 = vshrl.u32 %v294, 16
    %v299 = vshll.u32 %v295, 16
    %v300 = vshrl.u32 %v295, 16
    %vm301 = vc.u32 %v293, %v297
    %v302 = vsel %vm301, 1, 0
    %v303 = vadd.s32 %v293, %v297
    %v304 = vadd.s32 %v296, %v302
    %vm305 = vc.u32 %v303, %v299
    %v306 = vsel %vm305, 1, 0
    %v307 = vadd.s32 %v303, %v299
    %v308 = vadd.s32 %v304, %v306
    %v309 = vadd.s32 %v308, %v298
    %v310 = vadd.s32 %v309, %v300
    %v311 = vand.u32 %v288, 65535
    %v312 = vshrl.u32 %v288, 16
    %v313 = vand.u32 %v283, 65535
    %v314 = vshrl.u32 %v283, 16
    %v315 = vmul.u32 %v311, %v313
    %v316 = vmul.u32 %v311, %v314
    %v317 = vmul.u32 %v312, %v313
    %v318 = vmul.u32 %v312, %v314
    %v319 = vshll.u32 %v316, 16
    %v320 = vshrl.u32 %v316, 16
    %v321 = vshll.u32 %v317, 16
    %v322 = vshrl.u32 %v317, 16
    %vm323 = vc.u32 %v315, %v319
    %v324 = vsel %vm323, 1, 0
    %v325 = vadd.s32 %v315, %v319
    %v326 = vadd.s32 %v318, %v324
    %vm327 = vc.u32 %v325, %v321
    %v328 = vsel %vm327, 1, 0
    %v329 = vadd.s32 %v325, %v321
    %v330 = vadd.s32 %v326, %v328
    %v331 = vadd.s32 %v330, %v320
    %v332 = vadd.s32 %v331, %v322
    %v333 = vmul.u32 %v288, %v279
    %v334 = vadd.s32 %v310, %v329
    %vm335 = vc.u32 %v310, %v329
    %v336 = vadd.s32 %v332, 1
    %v337 = vsel %vm335, %v336, %v332
    %v338 = vadd.s32 %v333, %v337
    %v339 = vadd.s32 %v338, 536870912
    %v340 = vshrl.u32 %v339, 30
    %v341 = vshll.u32 %v340, 30
    %v342 = vsub.s32 %v338, %v341
    %vm343 = vcmp.lt.s32.totalorder %v342, 0
    %v344 = vsub.s32 0, %v342
    %v345 = vsel %vm343, %v344, %v342
    %v346 = vclz %v345
    %v347 = vsub.s32 %v346, 2
    %vm348 = vcmp.gt.s32.totalorder 0, %v347
    %v349 = vsel %vm348, 0, %v347
    %v350 = vsub.s32 32, %v349
    %v351 = vshll.u32 %v342, %v349
    %v352 = vshrl.u32 %v334, %v350
    %v353 = vor.u32 %v351, %v352
    %v354 = vsub.s32 4294967266, %v349
    %v355 = vadd.s32 %v354, 127
    %v356 = vshll.u32 %v355, 23
    %v357 = vor.u32 4788187, %v356
    %v358 = vand.u32 2147483647, %v357
    %v360 = vcvt.s32.f32 %v353
    %v361 = vmul.f32 %v360, %v358
    %v362 = vxor.u32 %v361, 2147483648
    %v363 = vsel %vm242, %v362, %v361
    %v364 = vsub.s32 4, %v340
    %v365 = vsel %vm242, %v364, %v340
    %v366 = vsel %vm241, %v83, %v363
    %v367 = vsel %vm241, 0, %v365
    %v368 = vmul.f32 %v366, %v366
    %v369 = vmul.f32 %v368, -0.001358992
    %v370 = vadd.f32 %v369, 0.041655596
    %v371 = vmul.f32 %v368, %v370
    %v372 = vadd.f32 %v371, -0.4999988
    %v373 = vmul.f32 %v368, %v372
    %v374 = vadd.f32 1.0, %v373
    %v375 = vmul.f32 %v366, %v366
    %v376 = vmul.f32 %v375, -0.00019511016
    %v377 = vadd.f32 %v376, 0.008332121
    %v378 = vmul.f32 %v375, %v377
    %v379 = vadd.f32 %v378, -0.16666654
    %v380 = vmul.f32 %v375, %v379
    %v381 = vadd.f32 %v380, 1.0
    %v382 = vmul.f32 %v381, %v366
    %vm383 = vweird.f32 %v83
    %v384 = vadd.s32 %v367, 3
    %v385 = vand.u32 %v384, 3
    %vm386 = vcmp.lt.s32.totalorder %v385, 2
    %vm387 = vcmp.eq.s32.totalorder %v385, 0
    %v388 = vxor.u32 %v382, 2147483648
    %v389 = vsel %vm387, %v374, %v388
    %vm390 = vcmp.eq.s32.totalorder %v385, 2
    %v391 = vxor.u32 %v374, 2147483648
    %v392 = vsel %vm390, %v391, %v382
    %v393 = vsel %vm386, %v389, %v392
    %v394 = vsel %vm383, nan, %v393
    %v395 = vmul.f32 %v82, %v394
    %396 = vst [vmem:[#allocation3 + $0x8] sm:$0xff] %v395
    // Predicated region
    $region6: #{tpu_custom_call.1} parent=1 // pred_check
      _
    $region7: #{tpu_custom_call.1} parent=1 // pred_check_branch
      %398 = sbr.rel (0) target = $region9
    $region8: #{tpu_custom_call.1} parent=1 // pred_region
      %400 = vsyncadd [#allocation4], 0
      %s401 = sshll.u32 [#allocation3], 4
      %s402 = int_to_ptr.vmem [resolvable:$true] %s401
      %s403 = sshll.u32 %s1, 4
      %s404 = int_to_ptr.hbm [resolvable:$true] %s403
      %409 = dma.vmem_to_hbm [thread:$0]  %s402, 256, %s404, [#allocation4], 128, 128, 8
    $region9: #{tpu_custom_call.1} parent=1 // pred_fallthru
      _
    // Predicated region
    $region10: #{tpu_custom_call.1} parent=1 // pred_check
      _
    $region11: #{tpu_custom_call.1} parent=1 // pred_check_branch
      %411 = sbr.rel (0) target = $region13
    $region12: #{tpu_custom_call.1} parent=1 // pred_region
      %413 = dma.done [#allocation4], 256
    $region13: #{tpu_custom_call.1} parent=1 // pred_fallthru
      _
    %414 = vsyncpa [#allocation4], 1

</llo_original>
